<compile_context>
chip_gen: v7x
topology: tpu7x:2x2x1
jax: 0.10.0
libtpu: 0.0.40
codegen_flags: <defaults>
</compile_context>

<pallas_src>
import jax
import jax.numpy as jnp
from jax.experimental import pallas as pl
from jax.experimental.pallas import tpu as pltpu


def _mish_kernel(x_ref, o_ref):
    x = x_ref[...].astype(jnp.float32)
    # tanh(softplus(x)) = (e^{2x} + 2 e^x) / (e^{2x} + 2 e^x + 2)
    # Stable form with a single exp of -|x| (no cancellation for x << 0):
    #   x >= 0, t = exp(-x):  (1 + 2t)   / (1 + 2t + 2t^2)
    #   x <  0, u = exp(x) :  (u^2 + 2u) / (u^2 + 2u + 2)
    a = jnp.exp(-jnp.abs(x))
    two_a = a + a
    pos = x >= 0.0
    num = jnp.where(pos, 1.0 + two_a, a * a + two_a)
    den = num + jnp.where(pos, a * two_a, 2.0)
    o_ref[...] = (x * (num / den)).astype(o_ref.dtype)


# ~4 MiB per block buffer regardless of dtype (1M f32 elems, 2M bf16 elems).
_TARGET_BLOCK_BYTES = 4 << 20


def _mish_fused_jnp(x):
    """Fallback for ragged sizes: single fused XLA elementwise pass."""
    xf = x.astype(jnp.float32)
    a = jnp.exp(-jnp.abs(xf))
    two_a = a + a
    pos = xf >= 0.0
    num = jnp.where(pos, 1.0 + two_a, a * a + two_a)
    den = num + jnp.where(pos, a * two_a, 2.0)
    return (xf * (num / den)).astype(x.dtype)


def mish(x):
    """Mish activation, elementwise over any shape (NCHW in the backbone)."""
    orig_shape = x.shape
    orig_dtype = x.dtype
    n = x.size
    itemsize = jnp.dtype(orig_dtype).itemsize

    # Largest lane-dense last dim (multiple of 128) that divides n exactly.
    lanes = 0
    for cand in (1024, 512, 256, 128):
        if n % cand == 0:
            lanes = cand
            break

    if lanes == 0 or n == 0:
        # Ragged element count: no padding copies — let XLA fuse one pass.
        return _mish_fused_jnp(x)

    rows = n // lanes
    x2d = x.reshape(rows, lanes)

    # Size the block by bytes; tile_rows is a multiple of 16 for all the
    # lane widths above (clean sublane packing for f32 and bf16).
    elems_per_block = max(_TARGET_BLOCK_BYTES // itemsize, lanes)
    tile_rows = max(elems_per_block // lanes, 1)
    if tile_rows >= rows:
        tile_rows = rows  # block == full array extent -> always legal
    grid = (pl.cdiv(rows, tile_rows),)

    cost = pl.CostEstimate(
        flops=13 * n,
        transcendentals=n,
        bytes_accessed=2 * n * itemsize,
    )

    out2d = pl.pallas_call(
        _mish_kernel,
        out_shape=jax.ShapeDtypeStruct((rows, lanes), orig_dtype),
        grid_spec=pltpu.PrefetchScalarGridSpec(
            num_scalar_prefetch=0,
            grid=grid,
            in_specs=[pl.BlockSpec((tile_rows, lanes), lambda i: (i, 0))],
            out_specs=pl.BlockSpec((tile_rows, lanes), lambda i: (i, 0)),
        ),
        compiler_params=pltpu.CompilerParams(
            dimension_semantics=("parallel",),
            vmem_limit_bytes=32 << 20,
        ),
        cost_estimate=cost,
    )(x2d)

    return out2d.reshape(orig_shape)


def mish_reference(x):
    xf = x.astype(jnp.float32)
    return (xf * jnp.tanh(jax.nn.softplus(xf))).astype(x.dtype)


if __name__ == "__main__":
    key = jax.random.PRNGKey(0)

    # NCHW input, matching the PyTorch module's usage inside a conv backbone.
    x = jax.random.normal(key, (2, 4, 16, 16), dtype=jnp.float32)
    out = mish(x)
    jax.block_until_ready(out)
    ref = mish_reference(x)
    assert out.shape == x.shape and out.dtype == x.dtype
    assert jnp.allclose(out, ref, atol=1e-5, rtol=1e-5), "f32 mismatch vs reference"

    # bf16 I/O path (halves HBM traffic in a bf16 model); looser tolerance for
    # output rounding only.
    xb = x.astype(jnp.bfloat16)
    outb = mish(xb)
    jax.block_until_ready(outb)
    refb = mish_reference(xb)
    assert outb.dtype == jnp.bfloat16
    assert jnp.allclose(outb.astype(jnp.float32), refb.astype(jnp.float32),
                        atol=2e-2, rtol=2e-2), "bf16 mismatch vs reference"

    # Ragged size exercises the fused-XLA fallback (no pad/slice passes).
    xr = jax.random.normal(jax.random.PRNGKey(1), (3, 5, 7, 11), dtype=jnp.float32)
    outr = mish(xr)
    jax.block_until_ready(outr)
    assert jnp.allclose(outr, mish_reference(xr), atol=1e-5, rtol=1e-5), \
        "ragged mismatch vs reference"

    print("KERNEL_OK")
</pallas_src>

<mosaic_0001>
module attributes {stable_mosaic.version = 11 : i64} {
  func.func @_mish_kernel(%arg0: i32, %arg1: memref<2x1024xf32, #tpu.memory_space<vmem>>, %arg2: memref<2x1024xf32, #tpu.memory_space<vmem>>) attributes {dimension_semantics = [#tpu.dimension_semantics<parallel>], iteration_bounds = array<i64: 1>, scalar_prefetch = 0 : i64, scratch_operands = 0 : i64, tpu.core_type = #tpu.core_type<tc>, window_params = [{transform_indices = @transform_0, window_bounds = array<i64: 2, 1024>}, {transform_indices = @transform_1, window_bounds = array<i64: 2, 1024>}]} {
    %c0 = arith.constant 0 : index
    %c0_0 = arith.constant 0 : index
    %0 = vector.load %arg1[%c0, %c0_0] : memref<2x1024xf32, #tpu.memory_space<vmem>>, vector<2x1024xf32>
    %1 = math.absf %0 : vector<2x1024xf32>
    %cst = arith.constant 0.000000e+00 : f32
    %2 = vector.broadcast %cst : f32 to vector<2x1024xf32>
    %3 = arith.subf %2, %1 : vector<2x1024xf32>
    %4 = math.exp %3 : vector<2x1024xf32>
    %5 = arith.addf %4, %4 : vector<2x1024xf32>
    %cst_1 = arith.constant 0.000000e+00 : f32
    %6 = vector.broadcast %cst_1 : f32 to vector<2x1024xf32>
    %7 = arith.cmpf oge, %0, %6 : vector<2x1024xf32>
    %cst_2 = arith.constant 1.000000e+00 : f32
    %8 = vector.broadcast %cst_2 : f32 to vector<2x1024xf32>
    %9 = arith.addf %8, %5 : vector<2x1024xf32>
    %10 = arith.mulf %4, %4 : vector<2x1024xf32>
    %11 = arith.addf %10, %5 : vector<2x1024xf32>
    %12 = arith.select %7, %9, %11 : vector<2x1024xi1>, vector<2x1024xf32>
    %13 = arith.mulf %4, %5 : vector<2x1024xf32>
    %cst_3 = arith.constant 2.000000e+00 : f32
    %14 = vector.broadcast %cst_3 : f32 to vector<2x1024xf32>
    %15 = arith.select %7, %13, %14 : vector<2x1024xi1>, vector<2x1024xf32>
    %16 = arith.addf %12, %15 : vector<2x1024xf32>
    %17 = arith.divf %12, %16 : vector<2x1024xf32>
    %18 = arith.mulf %0, %17 : vector<2x1024xf32>
    %c0_4 = arith.constant 0 : index
    %c0_5 = arith.constant 0 : index
    %19 = vector.load %arg2[%c0_4, %c0_5] : memref<2x1024xf32, #tpu.memory_space<vmem>>, vector<2x1024xf32>
    tpu.vector_store %arg2[%c0_4, %c0_5], %18 {strides = array<i32>} : memref<2x1024xf32, #tpu.memory_space<vmem>>, vector<2x1024xf32>,
    return
  }
  func.func @transform_0(%arg0: i32) -> (i32, i32) {
    %c0_i32 = arith.constant 0 : i32
    %c0_i32_0 = arith.constant 0 : i32
    return %arg0, %c0_i32 : i32, i32
  }
  func.func @transform_1(%arg0: i32) -> (i32, i32) {
    %c0_i32 = arith.constant 0 : i32
    %c0_i32_0 = arith.constant 0 : i32
    return %arg0, %c0_i32 : i32, i32
  }
}

</mosaic_0001>

<llo_original>
// kernel: tpu_custom_call.1
$region0: #{tpu_custom_call.1}
  #allocation0 [shape = 'u32[]', space=smem, size = 0x4, offset = 0x4, fixed_abs, tag = 'smem constant byte address 0x4 - core index']
  #allocation1 [shape = 'u32[144,128]{1,0:T(1,128)}', space=vmem, size = 0x12000, scoped, tag = 'internal scratch']
  %s0 = inlined_call_operand.hbm [shape: f32[2,1024], index: 0, kind: input, shape index: {}]
  %s1 = inlined_call_operand.hbm [shape: f32[2,1024], index: 1, kind: output, shape index: {}]
  %s2 = sld [smem:[#allocation0]]
  $region18: #{tpu_custom_call.1} parent=0
    _
  %s4 = ssub.s32 1, %s2
  %s5 = scalar_select 0, %s4, %s2
  $region1: #{tpu_custom_call.1} parent=0
    #allocation2 [shape = 'u8[8192]{0}', space=vmem, size = 0x2000, scoped, tag = 'input window, operand 0, single buffered']
    #allocation3 [shape = 's32[1]{0}', space=sflag, size = 0x4, scoped, tag = 'scoped memory for tpu_custom_call.1']
    #allocation4 [shape = 's32[1]{0}', space=sflag, size = 0x4, scoped, tag = 'scoped memory for tpu_custom_call.1']
    #allocation5 [shape = 'u8[8192]{0}', space=vmem, size = 0x2000, scoped, tag = 'output window, operand 0, single buffered']
    %6 = vsyncpa [#allocation3], 0
    %7 = vsyncpa [#allocation4], 0
    // Predicated region
    $region2: #{tpu_custom_call.1} parent=1 // pred_check
      _
    $region3: #{tpu_custom_call.1} parent=1 // pred_check_branch
      %9 = sbr.rel (0) target = $region5
    $region4: #{tpu_custom_call.1} parent=1 // pred_region
      %s11 = ssub.s32 256, 256
      %12 = vsyncadd [#allocation3], %s11
      %s14 = sshll.u32 [#allocation2], 4
      %s15 = int_to_ptr.vmem [resolvable:$true] %s14
      %17 = dma.hbm_to_vmem [thread:$0]  %s0, 256, %s15, [#allocation3]
    $region5: #{tpu_custom_call.1} parent=1 // pred_fallthru
      _
    // Predicated region
    $region6: #{tpu_custom_call.1} parent=1 // pred_check
      _
    $region7: #{tpu_custom_call.1} parent=1 // pred_check_branch
      %19 = sbr.rel (0) target = $region9
    $region8: #{tpu_custom_call.1} parent=1 // pred_region
      %20 = dma.done [#allocation3], 256
    $region9: #{tpu_custom_call.1} parent=1 // pred_fallthru
      _
    %v21 = vld [vmem:[#allocation2] sm:$0xff]
    %v22 = vld [vmem:[#allocation2 + $0x8] sm:$0xff]
    %v23 = vand.u32 2147483647, %v21
    %v24 = vand.u32 2147483647, %v22
    %v25 = vsub.f32 0.0, %v23
    %v26 = vsub.f32 0.0, %v24
    %v27 = vmul.f32 %v25, 1.442695
    %v28 = vpow.pop %v27
    %v29 = vmul.f32 %v26, 1.442695
    %v30 = vpow.pop %v29
    %v31 = vadd.f32 %v28, %v28
    %v32 = vadd.f32 %v30, %v30
    %vm33 = vcmp.ge.f32.partialorder %v21, 0.0
    %vm34 = vcmp.ge.f32.partialorder %v22, 0.0
    %v35 = vadd.f32 %v31, 1.0
    %v36 = vadd.f32 %v32, 1.0
    %v37 = vmul.f32 %v28, %v28
    %v38 = vmul.f32 %v30, %v30
    %v39 = vadd.f32 %v37, %v31
    %v40 = vadd.f32 %v38, %v32
    %v41 = vsel %vm33, %v35, %v39
    %v42 = vsel %vm34, %v36, %v40
    %v43 = vmul.f32 %v28, %v31
    %v44 = vmul.f32 %v30, %v32
    %v45 = vsel %vm33, %v43, 2.0
    %v46 = vsel %vm34, %v44, 2.0
    %v47 = vadd.f32 %v41, %v45
    %v48 = vadd.f32 %v42, %v46
    %v49 = vrcp.pop %v47
    %v50 = vmul.f32 %v41, %v49
    %v51 = vrcp.pop %v48
    %v52 = vmul.f32 %v42, %v51
    %v53 = vmul.f32 %v21, %v50
    %v54 = vmul.f32 %v22, %v52
    %55 = vst [vmem:[#allocation5] sm:$0xff] %v53
    %56 = vst [vmem:[#allocation5 + $0x8] sm:$0xff] %v54
    // Predicated region
    $region10: #{tpu_custom_call.1} parent=1 // pred_check
      _
    $region11: #{tpu_custom_call.1} parent=1 // pred_check_branch
      %58 = sbr.rel (0) target = $region13
    $region12: #{tpu_custom_call.1} parent=1 // pred_region
      %s60 = ssub.s32 256, 256
      %61 = vsyncadd [#allocation4], %s60
      %s63 = sshll.u32 [#allocation5], 4
      %s64 = int_to_ptr.vmem [resolvable:$true] %s63
      %66 = dma.vmem_to_hbm [thread:$0]  %s64, 256, %s1, [#allocation4]
    $region13: #{tpu_custom_call.1} parent=1 // pred_fallthru
      _
    // Predicated region
    $region14: #{tpu_custom_call.1} parent=1 // pred_check
      _
    $region15: #{tpu_custom_call.1} parent=1 // pred_check_branch
      %68 = sbr.rel (0) target = $region17
    $region16: #{tpu_custom_call.1} parent=1 // pred_region
      %69 = dma.done [#allocation4], 256
    $region17: #{tpu_custom_call.1} parent=1 // pred_fallthru
      _
    %70 = vsyncpa [#allocation3], 1
    %71 = vsyncpa [#allocation4], 1

</llo_original>
